<compile_context>
chip_gen: v7x
topology: tpu7x:2x2x1
jax: 0.10.0
libtpu: 0.0.40
codegen_flags: <defaults>
</compile_context>

<pallas_src>
import functools

import jax
import jax.numpy as jnp
from jax.experimental import pallas as pl
from jax.experimental.pallas import tpu as pltpu

COMPUTE_DTYPE = jnp.bfloat16
VMEM_LIMIT = 32 * 1024 * 1024          # safe on v5e/v6e (128 MiB) and v7x (64 MiB)


def _round_up(x, m):
    return (x + m - 1) // m * m


# -----------------------------------------------------------------------------
# Kernel 1: batched (per-image) tiled matmul  x_b @ W + bias  (+ optional aux op)
# -----------------------------------------------------------------------------
def _mm_kernel(*refs, has_aux, in_relu, out_relu):
    if has_aux:
        x_ref, x2_ref, w_ref, w2_ref, b_ref, o_ref = refs
    else:
        x_ref, w_ref, b_ref, o_ref = refs
    x = x_ref[0]
    if in_relu:
        x = jnp.maximum(x, 0)
    acc = jnp.dot(x, w_ref[...], preferred_element_type=jnp.float32)
    if has_aux:
        acc = acc + jnp.dot(x2_ref[0], w2_ref[...],
                            preferred_element_type=jnp.float32)
    acc = acc + b_ref[...].astype(jnp.float32)
    if out_relu:
        acc = jnp.maximum(acc, 0.0)
    o_ref[0] = acc.astype(o_ref.dtype)


def _mm_tile(M, K, N, K2=0):
    """Pick an M tile (multiple of 8) so double-buffered blocks + resident weight fit."""
    budget = 18 * 2**20
    per_row = 2 * (K + K2) * 2 + 2 * N * 2 + N * 4          # in dbl + out dbl + f32 acc
    fixed = (K + K2) * N * 2 + N * 4 + (1 << 20)
    tm = max(8, (budget - fixed) // per_row)
    tm = min(int(tm), 4096)
    tm = max((tm // 8) * 8, 8)
    if M <= tm:
        return M                                            # full extent is always legal
    return tm


def batched_matmul(x, w, b, *, aux=None, in_relu=False, out_relu=False,
                   out_dtype=None):
    """x: (B, M, K) @ w: (K, N) + b (N,).  aux = (x2 (1, M, K2), w2 (K2, N)) optional."""
    B, M, K = x.shape
    N = w.shape[1]
    cdt = COMPUTE_DTYPE
    x = x.astype(cdt)
    w = w.astype(cdt)
    bb = jnp.reshape(b, (1, N)).astype(jnp.float32)
    has_aux = aux is not None
    K2 = aux[0].shape[-1] if has_aux else 0
    TM = _mm_tile(M, K, N, K2)
    nM = pl.cdiv(M, TM)

    in_specs = [pl.BlockSpec((1, TM, K), lambda bi, mi: (bi, mi, 0))]
    args = [x]
    if has_aux:
        x2, w2 = aux
        in_specs.append(pl.BlockSpec((1, TM, K2), lambda bi, mi: (0, mi, 0)))
        args.append(x2.astype(cdt))
    in_specs.append(pl.BlockSpec((K, N), lambda bi, mi: (0, 0)))
    args.append(w)
    if has_aux:
        in_specs.append(pl.BlockSpec((K2, N), lambda bi, mi: (0, 0)))
        args.append(aux[1].astype(cdt))
    in_specs.append(pl.BlockSpec((1, N), lambda bi, mi: (0, 0)))
    args.append(bb)

    kernel = functools.partial(_mm_kernel, has_aux=has_aux, in_relu=in_relu,
                               out_relu=out_relu)
    return pl.pallas_call(
        kernel,
        out_shape=jax.ShapeDtypeStruct((B, M, N), out_dtype or cdt),
        grid=(B, nM),
        in_specs=in_specs,
        out_specs=pl.BlockSpec((1, TM, N), lambda bi, mi: (bi, mi, 0)),
        compiler_params=pltpu.CompilerParams(
            dimension_semantics=("parallel", "parallel"),
            vmem_limit_bytes=VMEM_LIMIT),
    )(*args)


# -----------------------------------------------------------------------------
# Kernel 2: 3x3 conv with replicate padding, no im2col.
# The padded input is flattened to (B, (H+2)*(W+2), Cin); each grid step manually
# DMAs a (TM + halo)-row slab (double-buffered) and accumulates 9 tap matmuls.
# Optionally applies a per-(batch, channel) affine + ReLU to the input first
# (this is the fused GroupNorm normalize/scale/shift + activation).
# -----------------------------------------------------------------------------
def _conv3x3_kernel(*refs, TM, HALO, taps, n_m, has_affine, pre_relu):
    if has_affine:
        w_ref, b_ref, a_ref, c_ref, x_hbm, o_ref, xbuf, sem = refs
    else:
        w_ref, b_ref, x_hbm, o_ref, xbuf, sem = refs
    bi = pl.program_id(0)
    mi = pl.program_id(1)
    TH = TM + HALO
    slot = mi & 1

    def _start(row_tile, s):
        pltpu.make_async_copy(
            x_hbm.at[bi, pl.ds(row_tile * TM, TH)], xbuf.at[s], sem.at[s]).start()

    @pl.when(mi == 0)                       # prime the pipeline at the start of each batch
    def _():
        _start(0, 0)

    pltpu.make_async_copy(x_hbm.at[bi, pl.ds(0, TH)], xbuf.at[slot],
                          sem.at[slot]).wait()

    @pl.when(mi + 1 < n_m)                  # prefetch next tile while computing this one
    def _():
        _start(mi + 1, 1 - slot)

    xs = xbuf[slot]                         # (TM + HALO, Cin)
    if has_affine or pre_relu:
        xf = xs.astype(jnp.float32)
        if has_affine:
            xf = xf * a_ref[0] + c_ref[0]   # fused GroupNorm affine
        if pre_relu:
            xf = jnp.maximum(xf, 0.0)
        xs = xf.astype(xs.dtype)

    acc = None
    for k in range(9):                      # 9 taps, accumulated in f32
        off = taps[k]
        part = jnp.dot(xs[off:off + TM], w_ref[k],
                       preferred_element_type=jnp.float32)
        acc = part if acc is None else acc + part
    acc = acc + b_ref[...].astype(jnp.float32)
    o_ref[0] = acc.astype(o_ref.dtype)


def _conv3x3_tile(M, Cin, Cout, HALO):
    budget = 14 * 2**20
    per_row = 2 * Cin * 2 + 2 * Cout * 2 + Cout * 4 + Cin * 4
    fixed = 2 * HALO * Cin * 2 + 9 * Cin * Cout * 2 + (2 << 20)
    tm = max(8, (budget - fixed) // per_row)
    tm = min(int(tm), 2048)
    tm = max((tm // 8) * 8, 8)
    return min(tm, _round_up(M, 8))


def conv3x3(x, w, b, *, pre_affine=None, pre_relu=False, out_dtype=None):
    """Conv2d(k=3, s=1, padding=1, padding_mode='replicate'); w: (Cout, Cin, 3, 3)."""
    B, H, W, Cin = x.shape
    Cout = w.shape[0]
    cdt = COMPUTE_DTYPE
    P = W + 2
    xp = jnp.pad(x, ((0, 0), (1, 1), (1, 1), (0, 0)), mode="edge").astype(cdt)
    xf = xp.reshape(B, (H + 2) * P, Cin)

    M = H * P
    HALO = _round_up(2 * P + 2, 8)
    TM = _conv3x3_tile(M, Cin, Cout, HALO)
    nM = pl.cdiv(M, TM)
    Mo = nM * TM
    Lx = Mo + HALO
    xf = jnp.pad(xf, ((0, 0), (0, Lx - (H + 2) * P), (0, 0)))

    wm = jnp.transpose(w, (2, 3, 1, 0)).reshape(9, Cin, Cout).astype(cdt)
    bb = jnp.reshape(b, (1, Cout)).astype(jnp.float32)
    taps = tuple(dy * P + dx for dy in range(3) for dx in range(3))

    has_affine = pre_affine is not None
    in_specs = [pl.BlockSpec((9, Cin, Cout), lambda bi, mi: (0, 0, 0)),
                pl.BlockSpec((1, Cout), lambda bi, mi: (0, 0))]
    args = [wm, bb]
    if has_affine:
        a_co, c_co = pre_affine
        in_specs += [pl.BlockSpec((1, 1, Cin), lambda bi, mi: (bi, 0, 0)),
                     pl.BlockSpec((1, 1, Cin), lambda bi, mi: (bi, 0, 0))]
        args += [a_co, c_co]
    in_specs.append(pl.BlockSpec(memory_space=pl.ANY))      # raw HBM ref, manual DMA
    args.append(xf)

    kernel = functools.partial(_conv3x3_kernel, TM=TM, HALO=HALO, taps=taps,
                               n_m=nM, has_affine=has_affine, pre_relu=pre_relu)
    out = pl.pallas_call(
        kernel,
        out_shape=jax.ShapeDtypeStruct((B, Mo, Cout), out_dtype or cdt),
        grid=(B, nM),
        in_specs=in_specs,
        out_specs=pl.BlockSpec((1, TM, Cout), lambda bi, mi: (bi, mi, 0)),
        scratch_shapes=[pltpu.VMEM((2, TM + HALO, Cin), cdt),
                        pltpu.SemaphoreType.DMA((2,))],
        compiler_params=pltpu.CompilerParams(
            dimension_semantics=("parallel", "arbitrary"),
            vmem_limit_bytes=VMEM_LIMIT),
    )(*args)
    return out[:, :M, :].reshape(B, H, P, Cout)[:, :, :W, :]


# -----------------------------------------------------------------------------
# Kernel 3: GroupNorm statistics (per-tile per-channel sum / sumsq); the normalize
# + ReLU is folded into the next conv as a per-channel affine.
# -----------------------------------------------------------------------------
def _gn_stats_kernel(x_ref, s_ref, q_ref, *, rows, tile):
    x = x_ref[0].astype(jnp.float32)
    r0 = pl.program_id(1) * tile
    ids = jax.lax.broadcasted_iota(jnp.int32, x.shape, 0) + r0
    xm = jnp.where(ids < rows, x, 0.0)
    s_ref[0, 0] = jnp.sum(xm, axis=0, keepdims=True)
    q_ref[0, 0] = jnp.sum(xm * xm, axis=0, keepdims=True)


def group_norm_affine_coeffs(x, gamma, beta, groups, eps=1e-5):
    """PyTorch GroupNorm (biased var, eps=1e-5) -> per-(batch, channel) scale/shift."""
    B, H, W, C = x.shape
    HW = H * W
    xr = x.reshape(B, HW, C)
    tile = HW if HW <= 4096 else 4096
    nT = pl.cdiv(HW, tile)
    s, q = pl.pallas_call(
        functools.partial(_gn_stats_kernel, rows=HW, tile=tile),
        out_shape=(jax.ShapeDtypeStruct((B, nT, 1, C), jnp.float32),
                   jax.ShapeDtypeStruct((B, nT, 1, C), jnp.float32)),
        grid=(B, nT),
        in_specs=[pl.BlockSpec((1, tile, C), lambda bi, ti: (bi, ti, 0))],
        out_specs=(pl.BlockSpec((1, 1, 1, C), lambda bi, ti: (bi, ti, 0, 0)),
                   pl.BlockSpec((1, 1, 1, C), lambda bi, ti: (bi, ti, 0, 0))),
        compiler_params=pltpu.CompilerParams(
            dimension_semantics=("parallel", "parallel"),
            vmem_limit_bytes=VMEM_LIMIT),
    )(xr)
    s = jnp.sum(s, axis=(1, 2))                 # (B, C)
    q = jnp.sum(q, axis=(1, 2))
    cg = C // groups
    sg = s.reshape(B, groups, cg).sum(-1)
    qg = q.reshape(B, groups, cg).sum(-1)
    cnt = float(HW * cg)
    mean = sg / cnt
    var = jnp.maximum(qg / cnt - mean * mean, 0.0)
    rstd = jax.lax.rsqrt(var + eps)
    rstd_c = jnp.repeat(rstd, cg, axis=-1)
    mean_c = jnp.repeat(mean, cg, axis=-1)
    a = rstd_c * gamma[None, :].astype(jnp.float32)
    c = beta[None, :].astype(jnp.float32) - mean_c * a
    return a.reshape(B, 1, C), c.reshape(B, 1, C)


# -----------------------------------------------------------------------------
# Kernel 4: bilinear resize (align_corners=False) with C kept on the lane axis,
# appending the uv channels inside the second pass (no uv concat in HBM).
# -----------------------------------------------------------------------------
def _interp_matrix(in_size, out_size):
    i = jnp.arange(out_size, dtype=jnp.float32)
    src = jnp.maximum((i + 0.5) * (in_size / out_size) - 0.5, 0.0)
    x0 = jnp.clip(jnp.floor(src).astype(jnp.int32), 0, in_size - 1)
    x1 = jnp.clip(x0 + 1, 0, in_size - 1)
    lam = src - x0.astype(jnp.float32)
    rows = jnp.arange(out_size)
    m = jnp.zeros((out_size, in_size), jnp.float32)
    m = m.at[rows, x0].add(1.0 - lam)
    m = m.at[rows, x1].add(lam)
    return m


def _resize_h_kernel(a_ref, x_ref, o_ref):
    o_ref[0] = jnp.dot(a_ref[...], x_ref[0],
                       preferred_element_type=jnp.float32).astype(o_ref.dtype)


def _resize_w_uv_kernel(a_ref, x_ref, uv_ref, o_ref):
    y = jnp.dot(a_ref[...], x_ref[0, 0], preferred_element_type=jnp.float32)
    o_ref[0, 0] = jnp.concatenate(
        [y.astype(o_ref.dtype), uv_ref[0].astype(o_ref.dtype)], axis=-1)


def bilinear_resize_append_uv(x, out_h, out_w, aspect):
    B, H, W, C = x.shape
    cdt = COMPUTE_DTYPE
    Ah = _interp_matrix(H, out_h).astype(cdt)           # (out_h, H)
    Aw = _interp_matrix(W, out_w).astype(cdt)           # (out_w, W)

    xr = x.reshape(B, H, W * C).astype(cdt)
    ncols = W * C
    tn = ncols if ncols <= 4096 else 4096
    t = pl.pallas_call(
        _resize_h_kernel,
        out_shape=jax.ShapeDtypeStruct((B, out_h, ncols), cdt),
        grid=(B, pl.cdiv(ncols, tn)),
        in_specs=[pl.BlockSpec((out_h, H), lambda bi, ni: (0, 0)),
                  pl.BlockSpec((1, H, tn), lambda bi, ni: (bi, 0, ni))],
        out_specs=pl.BlockSpec((1, out_h, tn), lambda bi, ni: (bi, 0, ni)),
        compiler_params=pltpu.CompilerParams(
            dimension_semantics=("parallel", "parallel"),
            vmem_limit_bytes=VMEM_LIMIT),
    )(Ah, xr)

    t = t.reshape(B, out_h, W, C)
    uv = normalized_view_plane_uv(out_w, out_h, aspect).astype(cdt)  # (out_h, out_w, 2)
    return pl.pallas_call(
        _resize_w_uv_kernel,
        out_shape=jax.ShapeDtypeStruct((B, out_h, out_w, C + 2), cdt),
        grid=(B, out_h),
        in_specs=[pl.BlockSpec((out_w, W), lambda bi, hi: (0, 0)),
                  pl.BlockSpec((1, 1, W, C), lambda bi, hi: (bi, hi, 0, 0)),
                  pl.BlockSpec((1, out_w, 2), lambda bi, hi: (hi, 0, 0))],
        out_specs=pl.BlockSpec((1, 1, out_w, C + 2),
                               lambda bi, hi: (bi, hi, 0, 0)),
        compiler_params=pltpu.CompilerParams(
            dimension_semantics=("parallel", "parallel"),
            vmem_limit_bytes=VMEM_LIMIT),
    )(Aw, t, uv)


# -----------------------------------------------------------------------------
# Glue ops built on the kernels
# -----------------------------------------------------------------------------
def normalized_view_plane_uv(width, height, aspect_ratio, dtype=jnp.float32):
    span_x = aspect_ratio / (1.0 + aspect_ratio ** 2) ** 0.5
    span_y = 1.0 / (1.0 + aspect_ratio ** 2) ** 0.5
    u = jnp.linspace(-span_x * (width - 1) / width, span_x * (width - 1) / width,
                     width, dtype=jnp.float32)
    v = jnp.linspace(-span_y * (height - 1) / height, span_y * (height - 1) / height,
                     height, dtype=jnp.float32)
    uu, vv = jnp.meshgrid(u, v, indexing="xy")          # each (height, width)
    return jnp.stack([uu, vv], axis=-1).astype(dtype)   # (H, W, 2)


def conv_transpose_2x2_s2(x, w, b, uv):
    """ConvTranspose2d(k=2, s=2); w: (Cin+2, Cout, 2, 2).  The uv channels enter as a
    tiny aux matmul operand instead of being concatenated into x."""
    B, H, W, Cin = x.shape
    Cout = w.shape[1]
    w_all = jnp.transpose(w, (0, 2, 3, 1)).reshape(Cin + 2, 4 * Cout)  # (dy,dx,co) cols
    wx, wuv = w_all[:Cin], w_all[Cin:]
    bm = jnp.tile(b, 4)
    y = batched_matmul(x.reshape(B, H * W, Cin), wx, bm,
                       aux=(uv.reshape(1, H * W, 2), wuv))
    y = y.reshape(B, H, W, 2, 2, Cout)
    y = jnp.transpose(y, (0, 1, 3, 2, 4, 5)).reshape(B, 2 * H, 2 * W, Cout)
    return y


def residual_block(x, p):
    a1, c1 = group_norm_affine_coeffs(x, p["gn1_g"], p["gn1_b"],
                                      groups=p["gn1_groups"])
    h = conv3x3(x, p["conv1_w"], p["conv1_b"], pre_affine=(a1, c1), pre_relu=True)
    a2, c2 = group_norm_affine_coeffs(h, p["gn2_g"], p["gn2_b"],
                                      groups=p["gn2_groups"])
    h = conv3x3(h, p["conv2_w"], p["conv2_b"], pre_affine=(a2, c2), pre_relu=True)
    return x + h


def _block_diag_conv(ws):
    kh, kw = ws[0].shape[2], ws[0].shape[3]
    co = sum(w.shape[0] for w in ws)
    ci = sum(w.shape[1] for w in ws)
    out = jnp.zeros((co, ci, kh, kw), ws[0].dtype)
    ro = cb = 0
    for w in ws:
        out = out.at[ro:ro + w.shape[0], cb:cb + w.shape[1]].set(w)
        ro += w.shape[0]
        cb += w.shape[1]
    return out


def _fuse_output_blocks(obs):
    """Fuse all output heads into one channel-concatenated / block-diagonal head so the
    full-resolution activations are read once."""
    fused = {
        "conv_in_w": jnp.concatenate([ob["conv_in_w"] for ob in obs], axis=0),
        "conv_in_b": jnp.concatenate([ob["conv_in_b"] for ob in obs], axis=0),
        "conv_out_w": _block_diag_conv([ob["conv_out_w"] for ob in obs]),
        "conv_out_b": jnp.concatenate([ob["conv_out_b"] for ob in obs], axis=0),
        "dims_out": [int(ob["conv_out_w"].shape[0]) for ob in obs],
        "res_blocks": [],
    }
    for j in range(len(obs[0]["res_blocks"])):
        parts = [ob["res_blocks"][j] for ob in obs]
        fused["res_blocks"].append({
            "gn1_g": jnp.concatenate([p["gn1_g"] for p in parts]),
            "gn1_b": jnp.concatenate([p["gn1_b"] for p in parts]),
            "gn1_groups": sum(p["gn1_groups"] for p in parts),
            "conv1_w": _block_diag_conv([p["conv1_w"] for p in parts]),
            "conv1_b": jnp.concatenate([p["conv1_b"] for p in parts]),
            "gn2_g": jnp.concatenate([p["gn2_g"] for p in parts]),
            "gn2_b": jnp.concatenate([p["gn2_b"] for p in parts]),
            "gn2_groups": sum(p["gn2_groups"] for p in parts),
            "conv2_w": _block_diag_conv([p["conv2_w"] for p in parts]),
            "conv2_b": jnp.concatenate([p["conv2_b"] for p in parts]),
        })
    return fused


# -----------------------------------------------------------------------------
# Head forward (NHWC internally)
# -----------------------------------------------------------------------------
def head_forward(params, hidden_states, image):
    B = image.shape[0]
    img_h, img_w = image.shape[-2], image.shape[-1]
    ph, pw = img_h // 14, img_w // 14
    aspect = img_w / img_h
    cdt = COMPUTE_DTYPE

    # --- fused per-feature 1x1 projections + sum over features ---
    feats = jnp.concatenate([f for f, _cls in hidden_states], axis=-1)
    wcat = jnp.concatenate([p["w"][:, :, 0, 0].T for p in params["projects"]], axis=0)
    bsum = sum(p["b"] for p in params["projects"])
    x = batched_matmul(feats, wcat, bsum)                 # (B, ph*pw, dim_proj)
    x = x.reshape(B, ph, pw, -1)

    # --- upsample blocks (uv folded into the deconv) ---
    for blk in params["upsample_blocks"]:
        H, W = x.shape[1], x.shape[2]
        uv = normalized_view_plane_uv(W, H, aspect, dtype=cdt)
        x = conv_transpose_2x2_s2(x, blk["deconv_w"], blk["deconv_b"], uv)
        x = conv3x3(x, blk["conv_w"], blk["conv_b"])
        for rb in blk["res_blocks"]:
            x = residual_block(x, rb)

    # --- resize to image resolution (uv appended inside the resize kernel) ---
    x = bilinear_resize_append_uv(x, img_h, img_w, aspect)   # (B, img_h, img_w, C+2)

    # --- fused output heads ---
    ob = _fuse_output_blocks(params["output_blocks"])
    y = conv3x3(x, ob["conv_in_w"], ob["conv_in_b"])
    for rb in ob["res_blocks"]:
        y = residual_block(y, rb)
    k = ob["conv_out_w"].shape[-1]
    if k == 1:
        wt = ob["conv_out_w"][:, :, 0, 0].T
        z = batched_matmul(y.reshape(B, img_h * img_w, y.shape[-1]), wt,
                           ob["conv_out_b"], in_relu=True, out_dtype=jnp.float32)
        z = z.reshape(B, img_h, img_w, -1)
    else:
        z = conv3x3(y, ob["conv_out_w"], ob["conv_out_b"], pre_relu=True,
                    out_dtype=jnp.float32)

    outs = []
    off = 0
    for do in ob["dims_out"]:
        o = z[..., off:off + do]
        off += do
        outs.append(jnp.transpose(o, (0, 3, 1, 2)).astype(jnp.float32))  # NCHW
    return outs


# -----------------------------------------------------------------------------
# Deterministic parameter initialization (shapes per Head.__init__)
# -----------------------------------------------------------------------------
class _Keys:
    def __init__(self, key):
        self.key, self.n = key, 0

    def __call__(self):
        self.n += 1
        return jax.random.fold_in(self.key, self.n)


def _conv_init(key, cout, cin, kh, kw):
    kw_, kb_ = jax.random.split(key)
    bound = 1.0 / (cin * kh * kw) ** 0.5
    w = jax.random.uniform(kw_, (cout, cin, kh, kw), jnp.float32, -bound, bound)
    b = jax.random.uniform(kb_, (cout,), jnp.float32, -bound, bound)
    return w, b


def _deconv_init(key, cin, cout):
    kw_, kb_ = jax.random.split(key)
    bound = 1.0 / (cout * 4) ** 0.5
    w = jax.random.uniform(kw_, (cin, cout, 2, 2), jnp.float32, -bound, bound)
    # Head.MakeUpsampler: weight.data[:] = weight.data[:, :, :1, :1]
    w = jnp.tile(w[:, :, :1, :1], (1, 1, 2, 2))
    b = jax.random.uniform(kb_, (cout,), jnp.float32, -bound, bound)
    return w, b


def _init_resblock(kg, channels, hidden, norm):
    c1w, c1b = _conv_init(kg(), hidden, channels, 3, 3)
    c2w, c2b = _conv_init(kg(), channels, hidden, 3, 3)
    return {
        "gn1_g": jnp.ones((channels,), jnp.float32),
        "gn1_b": jnp.zeros((channels,), jnp.float32),
        "gn1_groups": 1,
        "conv1_w": c1w, "conv1_b": c1b,
        "gn2_g": jnp.ones((hidden,), jnp.float32),
        "gn2_b": jnp.zeros((hidden,), jnp.float32),
        "gn2_groups": (hidden // 32) if norm == "group_norm" else 1,
        "conv2_w": c2w, "conv2_b": c2b,
    }


def init_head_params(key, *, num_features, dim_in, dim_out, dim_proj, dim_upsample,
                     dim_times_res_block_hidden=1, num_res_blocks=1,
                     res_block_norm="group_norm", last_res_blocks=0,
                     last_conv_channels=32, last_conv_size=1):
    kg = _Keys(key)
    params = {}
    params["projects"] = [
        dict(zip(("w", "b"), _conv_init(kg(), dim_proj, dim_in, 1, 1)))
        for _ in range(num_features)
    ]
    ups = []
    for in_ch, out_ch in zip([dim_proj] + dim_upsample[:-1], dim_upsample):
        dw, db = _deconv_init(kg(), in_ch + 2, out_ch)
        cw, cb = _conv_init(kg(), out_ch, out_ch, 3, 3)
        rbs = [_init_resblock(kg, out_ch, dim_times_res_block_hidden * out_ch,
                              res_block_norm) for _ in range(num_res_blocks)]
        ups.append({"deconv_w": dw, "deconv_b": db, "conv_w": cw, "conv_b": cb,
                    "res_blocks": rbs})
    params["upsample_blocks"] = ups
    obs = []
    for do in dim_out:
        ciw, cib = _conv_init(kg(), last_conv_channels, dim_upsample[-1] + 2, 3, 3)
        rbs = [_init_resblock(kg, last_conv_channels,
                              dim_times_res_block_hidden * last_conv_channels,
                              res_block_norm) for _ in range(last_res_blocks)]
        cow, cob = _conv_init(kg(), do, last_conv_channels,
                              last_conv_size, last_conv_size)
        obs.append({"conv_in_w": ciw, "conv_in_b": cib, "res_blocks": rbs,
                    "conv_out_w": cow, "conv_out_b": cob})
    params["output_blocks"] = obs
    return params


# -----------------------------------------------------------------------------
if __name__ == "__main__":
    key = jax.random.PRNGKey(0)

    # Small-but-consistent configuration
    B = 2
    num_features = 2
    dim_in = 32
    dim_out = [3, 1]
    dim_proj = 64
    dim_upsample = [32, 32, 32]
    img_h = img_w = 28                      # patch grid = (2, 2) since 28 // 14 = 2
    ph, pw = img_h // 14, img_w // 14

    kp, ki, kf, kc = jax.random.split(key, 4)
    params = init_head_params(
        kp, num_features=num_features, dim_in=dim_in, dim_out=dim_out,
        dim_proj=dim_proj, dim_upsample=dim_upsample)

    image = jax.random.normal(ki, (B, 3, img_h, img_w), jnp.float32)
    hidden_states = []
    for i in range(num_features):
        feat = jax.random.normal(jax.random.fold_in(kf, i), (B, ph * pw, dim_in),
                                 jnp.float32)
        cls = jax.random.normal(jax.random.fold_in(kc, i), (B, dim_in), jnp.float32)
        hidden_states.append((feat, cls))

    outs = head_forward(params, hidden_states, image)
    outs = jax.block_until_ready(outs)

    assert len(outs) == len(dim_out)
    for o, do in zip(outs, dim_out):
        assert o.shape == (B, do, img_h, img_w), o.shape
        assert bool(jnp.all(jnp.isfinite(o)))
    print("KERNEL_OK")
</pallas_src>

<mosaic_0001>
module attributes {stable_mosaic.version = 11 : i64} {
  func.func @_mm_kernel(%arg0: i32, %arg1: i32, %arg2: memref<1x4x64xbf16, #tpu.memory_space<vmem>>, %arg3: memref<64x64xbf16, #tpu.memory_space<vmem>>, %arg4: memref<1x64xf32, #tpu.memory_space<vmem>>, %arg5: memref<1x4x64xbf16, #tpu.memory_space<vmem>>) attributes {dimension_semantics = [#tpu.dimension_semantics<parallel>, #tpu.dimension_semantics<parallel>], iteration_bounds = array<i64: 2, 1>, scalar_prefetch = 0 : i64, scratch_operands = 0 : i64, tpu.core_type = #tpu.core_type<tc>, window_params = [{transform_indices = @transform_0, window_bounds = array<i64: 1, 4, 64>}, {pipeline_mode = #tpu.pipeline_mode<synchronous>, transform_indices = @transform_1, window_bounds = array<i64: 64, 64>}, {pipeline_mode = #tpu.pipeline_mode<synchronous>, transform_indices = @transform_2, window_bounds = array<i64: 1, 64>}, {transform_indices = @transform_3, window_bounds = array<i64: 1, 4, 64>}]} {
    %c0 = arith.constant 0 : index
    %c0_0 = arith.constant 0 : index
    %c0_1 = arith.constant 0 : index
    %0 = vector.load %arg2[%c0, %c0_0, %c0_1] : memref<1x4x64xbf16, #tpu.memory_space<vmem>>, vector<1x4x64xbf16>
    %1 = vector.shape_cast %0 : vector<1x4x64xbf16> to vector<4x64xbf16>
    %c0_2 = arith.constant 0 : index
    %c0_3 = arith.constant 0 : index
    %2 = vector.load %arg3[%c0_2, %c0_3] : memref<64x64xbf16, #tpu.memory_space<vmem>>, vector<64x64xbf16>
    %cst = arith.constant dense<0.000000e+00> : vector<4x64xf32>
    %3 = tpu.matmul %1, %2, %cst {dimension_numbers = #tpu.dot_dimension_numbers<[1], [0], [0], [1], [0, 0, 1, 1], [], []>} : vector<4x64xbf16>, vector<64x64xbf16>, vector<4x64xf32> -> vector<4x64xf32>
    %c0_4 = arith.constant 0 : index
    %c0_5 = arith.constant 0 : index
    %4 = vector.load %arg4[%c0_4, %c0_5] : memref<1x64xf32, #tpu.memory_space<vmem>>, vector<1x64xf32>
    %5 = vector.broadcast %4 : vector<1x64xf32> to vector<4x64xf32>
    %6 = arith.addf %3, %5 : vector<4x64xf32>
    %7 = arith.truncf %6 : vector<4x64xf32> to vector<4x64xbf16>
    %c0_6 = arith.constant 0 : index
    %c0_7 = arith.constant 0 : index
    %c0_8 = arith.constant 0 : index
    %8 = vector.load %arg5[%c0_6, %c0_7, %c0_8] : memref<1x4x64xbf16, #tpu.memory_space<vmem>>, vector<1x4x64xbf16>
    %9 = vector.shape_cast %8 : vector<1x4x64xbf16> to vector<4x64xbf16>
    %10 = vector.shape_cast %7 : vector<4x64xbf16> to vector<1x4x64xbf16>
    tpu.vector_store %arg5[%c0_6, %c0_7, %c0_8], %10 {strides = array<i32>} : memref<1x4x64xbf16, #tpu.memory_space<vmem>>, vector<1x4x64xbf16>,
    return
  }
  func.func @transform_0(%arg0: i32, %arg1: i32) -> (i32, i32, i32) {
    %c0_i32 = arith.constant 0 : i32
    %c0_i32_0 = arith.constant 0 : i32
    return %arg0, %arg1, %c0_i32 : i32, i32, i32
  }
  func.func @transform_1(%arg0: i32, %arg1: i32) -> (i32, i32) {
    %c0_i32 = arith.constant 0 : i32
    %c0_i32_0 = arith.constant 0 : i32
    %c0_i32_1 = arith.constant 0 : i32
    return %c0_i32, %c0_i32_0 : i32, i32
  }
  func.func @transform_2(%arg0: i32, %arg1: i32) -> (i32, i32) {
    %c0_i32 = arith.constant 0 : i32
    %c0_i32_0 = arith.constant 0 : i32
    %c0_i32_1 = arith.constant 0 : i32
    return %c0_i32, %c0_i32_0 : i32, i32
  }
  func.func @transform_3(%arg0: i32, %arg1: i32) -> (i32, i32, i32) {
    %c0_i32 = arith.constant 0 : i32
    %c0_i32_0 = arith.constant 0 : i32
    return %arg0, %arg1, %c0_i32 : i32, i32, i32
  }
}

</mosaic_0001>

<llo_original>
// kernel: tpu_custom_call.1
$region0: #{tpu_custom_call.1}
  #allocation0 [shape = 'u32[]', space=smem, size = 0x4, offset = 0x4, fixed_abs, tag = 'smem constant byte address 0x4 - core index']
  #allocation1 [shape = 'u32[144,128]{1,0:T(1,128)}', space=vmem, size = 0x12000, scoped, tag = 'internal scratch']
  %s0 = inlined_call_operand.hbm [shape: bf16[2,4,64], index: 0, kind: input, shape index: {}]
  %s1 = inlined_call_operand.hbm [shape: bf16[64,64], index: 1, kind: input, shape index: {}]
  %s2 = inlined_call_operand.vmem [shape: f32[1,64], index: 2, kind: input, shape index: {}]
  %s3 = inlined_call_operand.hbm [shape: bf16[2,4,64], index: 3, kind: output, shape index: {}]
  %s4 = sld [smem:[#allocation0]]
  $region53: #{tpu_custom_call.1} parent=0
    _
  %s6 = ssub.s32 1, %s4
  %s7 = scalar_select 0, %s6, %s4
  $region1: #{tpu_custom_call.1} parent=0
    #allocation2 [shape = 'u8[2048]{0}', space=vmem, size = 0x800, scoped, tag = 'input window, operand 0']
    #allocation3 [shape = 's32[2]{0}', space=sflag, size = 0x8, scoped, tag = 'scoped memory for tpu_custom_call.1']
    #allocation4 [shape = 's32[2]{0}', space=sflag, size = 0x8, scoped, tag = 'scoped memory for tpu_custom_call.1']
    #allocation5 [shape = 'u8[16384]{0}', space=vmem, size = 0x4000, scoped, tag = 'input window, operand 1, single buffered']
    #allocation6 [shape = 's32[1]{0}', space=sflag, size = 0x4, scoped, tag = 'scoped memory for tpu_custom_call.1']
    #allocation7 [shape = 'u8[2048]{0}', space=vmem, size = 0x800, scoped, tag = 'output window, operand 0']
    %8 = vsyncpa [#allocation3], 0
    %s9 = scalar_lea.sflag [#allocation3], 1
    %10 = vsyncpa %s9, 0
    %11 = vsyncpa [#allocation6], 0
    %12 = vsyncpa [#allocation4], 0
    %s13 = scalar_lea.sflag [#allocation4], 1
    %14 = vsyncpa %s13, 0
    loop: start=0, step=1, limit=4
    $region2: #{tpu_custom_call.1} parent=1 // loop_pre_header
      _
    $region3: #{tpu_custom_call.1} parent=1 // loop_header
      %s16 = sphi 0, %s20
      %p17 = scmp.ge.s32.totalorder %s16, 4
      %s23 = sphi 0, %s35
      %s24 = sphi 0, %s31
      %s25 = sphi 0, %s23
      %s26 = sphi 0, %s24
      %s27 = sphi 0, %s25
      %s28 = sphi 0, %s26
      %s40 = sphi 0, %s42
      %s43 = sphi 0, %s40
      %s44 = sphi 0, %s43
      %s60 = sphi 0, %s44
      %s64 = sphi 0, %s64
      %s66 = sphi 0, %s64
      %s67 = sphi 0, %s66
      %s81 = sphi 0, %s67
      %s85 = sphi 0, %s85
      %s87 = sphi 0, %s85
      %s88 = sphi 0, %s87
      %s102 = sphi 0, %s88
      %s110 = sphi 0, %s112
      %s113 = sphi 0, %s110
      %s114 = sphi 0, %s113
      %s130 = sphi 0, %s114
    $region4: #{tpu_custom_call.1} parent=1 // loop_header_branch
      %19 = sbr.rel (%p17) target = $region8
    $region5: #{tpu_custom_call.1} parent=1 // loop_body
      %s21 = ssub.s32 %s16, 1
      %s22 = ssub.s32 %s16, 2
      %s29 = sadd.s32 1, %s24
      %p30 = scmp.ge.s32.totalorder %s29, 1
      %s31 = scalar_select %p30, 0, %s29
      %s32 = sadd.s32 1, %s23
      %s33 = scalar_select %p30, %s32, %s23
      %p34 = scmp.ge.s32.totalorder %s33, 2
      %s35 = scalar_select %p34, 0, %s33
      %s36 = ssub.s32 %s23, %s35
      %s37 = ssub.s32 %s24, %s31
      %s38 = sor.u32 %s36, %s37
      %p39 = scmp.eq.s32.totalorder %s38, 0
      %s41 = sadd.s32 %s40, 1
      %s42 = scalar_select %p39, %s40, %s41
      %p45 = pneg %p39
      %p46 = scmp.eq.s32.totalorder %s16, 1
      %p47 = por %p45, %p46
      %p48 = scmp.ne.s32.totalorder %s40, %s43
      %p49 = scmp.eq.s32.totalorder %s16, 0
      %p50 = por %p48, %p49
      %p51 = scmp.ne.s32.totalorder %s40, %s43
      %p52 = scmp.eq.s32.totalorder %s21, 1
      %p53 = por %p51, %p52
      %p54 = scmp.ne.s32.totalorder %s43, %s44
      %p55 = scmp.eq.s32.totalorder %s21, 0
      %p56 = por %p54, %p55
      %p57 = scmp.ne.s32.totalorder %s43, %s44
      %p58 = scmp.eq.s32.totalorder %s22, 1
      %p59 = por %p57, %p58
      %p61 = scmp.ne.s32.totalorder %s44, %s60
      %p62 = scmp.eq.s32.totalorder %s22, 0
      %p63 = por %p61, %p62
      %s65 = sadd.s32 %s64, 1
      %p68 = scmp.eq.s32.totalorder %s16, 1
      %p69 = scmp.ne.s32.totalorder %s64, %s66
      %p70 = scmp.eq.s32.totalorder %s16, 0
      %p71 = por %p69, %p70
      %p72 = scmp.ne.s32.totalorder %s64, %s66
      %p73 = scmp.eq.s32.totalorder %s21, 1
      %p74 = por %p72, %p73
      %p75 = scmp.ne.s32.totalorder %s66, %s67
      %p76 = scmp.eq.s32.totalorder %s21, 0
      %p77 = por %p75, %p76
      %p78 = scmp.ne.s32.totalorder %s66, %s67
      %p79 = scmp.eq.s32.totalorder %s22, 1
      %p80 = por %p78, %p79
      %p82 = scmp.ne.s32.totalorder %s67, %s81
      %p83 = scmp.eq.s32.totalorder %s22, 0
      %p84 = por %p82, %p83
      %s86 = sadd.s32 %s85, 1
      %p89 = scmp.eq.s32.totalorder %s16, 1
      %p90 = scmp.ne.s32.totalorder %s85, %s87
      %p91 = scmp.eq.s32.totalorder %s16, 0
      %p92 = por %p90, %p91
      %p93 = scmp.ne.s32.totalorder %s85, %s87
      %p94 = scmp.eq.s32.totalorder %s21, 1
      %p95 = por %p93, %p94
      %p96 = scmp.ne.s32.totalorder %s87, %s88
      %p97 = scmp.eq.s32.totalorder %s21, 0
      %p98 = por %p96, %p97
      %p99 = scmp.ne.s32.totalorder %s87, %s88
      %p100 = scmp.eq.s32.totalorder %s22, 1
      %p101 = por %p99, %p100
      %p103 = scmp.ne.s32.totalorder %s88, %s102
      %p104 = scmp.eq.s32.totalorder %s22, 0
      %p105 = por %p103, %p104
      %s106 = ssub.s32 %s23, %s35
      %s107 = ssub.s32 %s24, %s31
      %s108 = sor.u32 %s106, %s107
      %p109 = scmp.eq.s32.totalorder %s108, 0
      %s111 = sadd.s32 %s110, 1
      %s112 = scalar_select %p109, %s110, %s111
      %p115 = pneg %p109
      %p116 = scmp.eq.s32.totalorder %s16, 1
      %p117 = por %p115, %p116
      %p118 = scmp.ne.s32.totalorder %s110, %s113
      %p119 = scmp.eq.s32.totalorder %s16, 0
      %p120 = por %p118, %p119
      %p121 = scmp.ne.s32.totalorder %s110, %s113
      %p122 = scmp.eq.s32.totalorder %s21, 1
      %p123 = por %p121, %p122
      %p124 = scmp.ne.s32.totalorder %s113, %s114
      %p125 = scmp.eq.s32.totalorder %s21, 0
      %p126 = por %p124, %p125
      %p127 = scmp.ne.s32.totalorder %s113, %s114
      %p128 = scmp.eq.s32.totalorder %s22, 1
      %p129 = por %p127, %p128
      %p131 = scmp.ne.s32.totalorder %s114, %s130
      %p132 = scmp.eq.s32.totalorder %s22, 0
      %p133 = por %p131, %p132
      %p134 = scmp.le.s32.totalorder 1, %s16
      %p135 = scmp.lt.s32.totalorder %s16, 3
      %p136 = pnand %p134, %p135
      %p137 = pneg %p136
      // Predicated region
      $region9: #{tpu_custom_call.1} parent=5 // pred_check
        _
      $region10: #{tpu_custom_call.1} parent=5 // pred_check_branch
        %139 = sbr.rel (%p136) target = $region12
      $region11: #{tpu_custom_call.1} parent=5 // pred_region
        %s140 = ssub.s32 %s16, 1
        // Predicated region
        $region13: #{tpu_custom_call.1} parent=11 // pred_check
          %p141 = pneg %p77
        $region14: #{tpu_custom_call.1} parent=11 // pred_check_branch
          %143 = sbr.rel (%p141) target = $region16
        $region15: #{tpu_custom_call.1} parent=11 // pred_region
          %s145 = ssub.s32 512, 512
          %146 = vsyncadd [#allocation6], %s145
          %s147 = sshll.u32 [#allocation5], 4
          %s148 = int_to_ptr.vmem [resolvable:$true] %s147
          %153 = dma.hbm_to_vmem [thread:$0]  %s1, 512, %s148, [#allocation6], 64, 64, 4
        $region16: #{tpu_custom_call.1} parent=11 // pred_fallthru
          _
        // Predicated region
        $region17: #{tpu_custom_call.1} parent=11 // pred_check
          %p154 = pneg %p98
        $region18: #{tpu_custom_call.1} parent=11 // pred_check_branch
          %156 = sbr.rel (%p154) target = $region20
        $region19: #{tpu_custom_call.1} parent=11 // pred_region
          _
        $region20: #{tpu_custom_call.1} parent=11 // pred_fallthru
          _
      $region12: #{tpu_custom_call.1} parent=5 // pred_fallthru
        _
      %p157 = scmp.lt.s32.totalorder %s16, 2
      // Predicated region
      $region21: #{tpu_custom_call.1} parent=5 // pred_check
        %p158 = pneg %p157
      $region22: #{tpu_custom_call.1} parent=5 // pred_check_branch
        %160 = sbr.rel (%p158) target = $region24
      $region23: #{tpu_custom_call.1} parent=5 // pred_region
        // Predicated region
        $region25: #{tpu_custom_call.1} parent=23 // pred_check
          %p161 = pneg %p50
        $region26: #{tpu_custom_call.1} parent=23 // pred_check_branch
          %163 = sbr.rel (%p161) target = $region28
        $region27: #{tpu_custom_call.1} parent=23 // pred_region
          %s164 = sand.u32 %s40, 1
          %s165 = scalar_lea.sflag [#allocation3], %s164
          %s166 = sand.u32 %s40, 1
          %s167 = smul.addr %s166, 2
          %s168 = scalar_lea.vmem [#allocation2], %s167
          %s170 = ssub.s32 32, 32
          %171 = vsyncadd %s165, %s170
          %s172 = sadd.s32 %s24, %s23
          %s173 = smul.addr %s172, 32
          %s174 = scalar_lea.hbm %s0, %s173
          %s176 = sshll.u32 %s168, 4
          %s177 = int_to_ptr.vmem [resolvable:$true] %s176
          %179 = dma.hbm_to_vmem [thread:$0]  %s174, 32, %s177, %s165
        $region28: #{tpu_custom_call.1} parent=23 // pred_fallthru
          _
      $region24: #{tpu_custom_call.1} parent=5 // pred_fallthru
        _
      %p180 = scmp.le.s32.totalorder 1, %s16
      %p181 = scmp.lt.s32.totalorder %s16, 3
      %p182 = pnand %p180, %p181
      %p183 = pneg %p182
      // Predicated region
      $region29: #{tpu_custom_call.1} parent=5 // pred_check
        _
      $region30: #{tpu_custom_call.1} parent=5 // pred_check_branch
        %185 = sbr.rel (%p182) target = $region32
      $region31: #{tpu_custom_call.1} parent=5 // pred_region
        %s186 = ssub.s32 %s16, 1
        %s187 = sand.u32 %s43, 1
        %s188 = scalar_lea.sflag [#allocation3], %s187
        %s189 = sand.u32 %s43, 1
        %s190 = smul.addr %s189, 2
        %s191 = scalar_lea.vmem [#allocation2], %s190
        // Predicated region
        $region33: #{tpu_custom_call.1} parent=31 // pred_check
          %p192 = pneg %p56
        $region34: #{tpu_custom_call.1} parent=31 // pred_check_branch
          %194 = sbr.rel (%p192) target = $region36
        $region35: #{tpu_custom_call.1} parent=31 // pred_region
          %195 = dma.done %s188, 32
        $region36: #{tpu_custom_call.1} parent=31 // pred_fallthru
          _
        // Predicated region
        $region37: #{tpu_custom_call.1} parent=31 // pred_check
          %p196 = pneg %p77
        $region38: #{tpu_custom_call.1} parent=31 // pred_check_branch
          %198 = sbr.rel (%p196) target = $region40
        $region39: #{tpu_custom_call.1} parent=31 // pred_region
          %199 = dma.done [#allocation6], 512
        $region40: #{tpu_custom_call.1} parent=31 // pred_fallthru
          _
        %s200 = sand.u32 %s43, 1
        %s201 = scalar_lea.sflag [#allocation3], %s200
        %s202 = sand.u32 %s43, 1
        %s203 = smul.addr %s202, 2
        %s204 = scalar_lea.vmem [#allocation2], %s203
        %p205 = pneg %p56
        %p206 = pneg %p53
        %p207 = pneg %p77
        %p208 = pneg %p74
        %p209 = pneg %p98
        %p210 = pneg %p95
        %p211 = pneg %p126
        %p212 = pneg %p123
        %s213 = sand.u32 %s113, 1
        %s214 = scalar_lea.sflag [#allocation4], %s213
        %s215 = sand.u32 %s113, 1
        %s216 = smul.addr %s215, 2
        %s217 = scalar_lea.vmem [#allocation7], %s216
        %v219 = vld [vmem:[%s191] sm:$0x3]
        %v220 = vld [vmem:[#allocation5] sm:$0xf]
        %v221 = vld [vmem:[#allocation5 + $0x4] sm:$0xf]
        %v222 = vld [vmem:[#allocation5 + $0x8] sm:$0xf]
        %v223 = vld [vmem:[#allocation5 + $0xc] sm:$0xf]
        %v224 = vld [vmem:[#allocation5 + $0x10] sm:$0xf]
        %v225 = vld [vmem:[#allocation5 + $0x14] sm:$0xf]
        %v226 = vld [vmem:[#allocation5 + $0x18] sm:$0xf]
        %v227 = vld [vmem:[#allocation5 + $0x1c] sm:$0xf]
        %v228 = vld [vmem:[%s2] sm:$0x1]
        %v230 = vlaneseq
        %v231 = vshrl.u32 %v230, 7
        %v232 = vsub.s32 0, %v231
        %v233 = vrot.slane %v228, %v232
        %v243 = vunpack.c.l.b16 %v220
        %v244 = vunpack.c.l.b16 %v221
        %v245 = vunpack.c.l.b16 %v222
        %v246 = vunpack.c.l.b16 %v223
        %v247 = vunpack.c.l.b16 %v224
        %v248 = vunpack.c.l.b16 %v225
        %v249 = vunpack.c.l.b16 %v226
        %v250 = vunpack.c.l.b16 %v227
        %v251 = vpack.c.b16 %v244, %v243
        %v252 = vpack.c.b16 %v246, %v245
        %v253 = vpack.c.b16 %v248, %v247
        %v254 = vpack.c.b16 %v250, %v249
        %vm259 = vcmask 523264
        %v261 = vsel %vm259, %v219, 0
        %263 = vmatprep.subr.bf16.mxu0 0
        %264 = vmatpush1.bf16.msra.mxu0 %v251
        %265 = vmatprep.subr.bf16.mxu0 0
        %266 = vmatpush1.bf16.msra.mxu0 %v252
        %267 = vmatprep.subr.bf16.mxu0 0
        %268 = vmatpush1.bf16.msra.mxu0 %v253
        %269 = vmatprep.subr.bf16.mxu0 0
        %270 = vmatpush1.bf16.msra.mxu0 %v254
        %271 = vmatprep.subr.bf16.mxu0 0
        %272 = vmatpush1.bf16.msra.mxu0 0
        %273 = vmatprep.subr.bf16.mxu0 0
        %274 = vmatpush1.bf16.msra.mxu0 0
        %275 = vmatprep.subr.bf16.mxu0 0
        %276 = vmatpush1.bf16.msra.mxu0 0
        %277 = vmatprep.subr.bf16.mxu0 0
        %278 = vmatpush1.bf16.msra.mxu0 0
        %279 = vmatprep.subr.bf16.mxu0 0
        %280 = vmatpush1.bf16.msra.mxu0 0
        %281 = vmatprep.subr.bf16.mxu0 0
        %282 = vmatpush1.bf16.msra.mxu0 0
        %283 = vmatprep.subr.bf16.mxu0 0
        %284 = vmatpush1.bf16.msra.mxu0 0
        %285 = vmatprep.subr.bf16.mxu0 0
        %286 = vmatpush1.bf16.msra.mxu0 0
        %287 = vmatprep.subr.bf16.mxu0 0
        %288 = vmatpush1.bf16.msra.mxu0 0
        %289 = vmatprep.subr.bf16.mxu0 0
        %290 = vmatpush1.bf16.msra.mxu0 0
        %291 = vmatprep.subr.bf16.mxu0 0
        %292 = vmatpush1.bf16.msra.mxu0 0
        %293 = vmatprep.subr.bf16.mxu0 0
        %294 = vmatpush1.bf16.msra.mxu0 0
        %295 = vmatprep.mubr.bf16.mxu0 0
        %296 = vmatmul.mubr.bf16.gmra.mrb[0].mxu0 %v261
        %v297 = vpop.f32.mrb[0].mxu0
        %v298 = vadd.f32 %v233, %v297
        %v299 = vpop.f32.mrb[0].mxu0
        %v300 = vpop.f32.mrb[0].mxu0
        %v301 = vpop.f32.mrb[0].mxu0
        %302 = vdwg.mxu0
        %v303 = vpack.c.bf16 %v298, %v298
        %vm304 = vcmask 517120
        %305 = vst.msk [vmem:[%s217] sm:$0x3] %vm304, %v303
        %s306 = sand.u32 %s113, 1
        %s307 = scalar_lea.sflag [#allocation4], %s306
        %s308 = sand.u32 %s113, 1
        %s309 = smul.addr %s308, 2
        %s310 = scalar_lea.vmem [#allocation7], %s309
        // Predicated region
        $region41: #{tpu_custom_call.1} parent=31 // pred_check
          %p311 = pneg %p123
        $region42: #{tpu_custom_call.1} parent=31 // pred_check_branch
          %313 = sbr.rel (%p311) target = $region44
        $region43: #{tpu_custom_call.1} parent=31 // pred_region
          %s315 = ssub.s32 32, 32
          %316 = vsyncadd %s307, %s315
          %s317 = sadd.s32 %s26, %s25
          %s318 = smul.addr %s317, 32
          %s319 = scalar_lea.hbm %s3, %s318
          %s321 = sshll.u32 %s310, 4
          %s322 = int_to_ptr.vmem [resolvable:$true] %s321
          %324 = dma.vmem_to_hbm [thread:$0]  %s322, 32, %s319, %s307
        $region44: #{tpu_custom_call.1} parent=31 // pred_fallthru
          _
      $region32: #{tpu_custom_call.1} parent=5 // pred_fallthru
        _
      %p325 = scmp.le.s32.totalorder 2, %s16
      // Predicated region
      $region45: #{tpu_custom_call.1} parent=5 // pred_check
        %p326 = pneg %p325
      $region46: #{tpu_custom_call.1} parent=5 // pred_check_branch
        %328 = sbr.rel (%p326) target = $region48
      $region47: #{tpu_custom_call.1} parent=5 // pred_region
        %s329 = ssub.s32 %s16, 2
        // Predicated region
        $region49: #{tpu_custom_call.1} parent=47 // pred_check
          %p330 = pneg %p129
        $region50: #{tpu_custom_call.1} parent=47 // pred_check_branch
          %332 = sbr.rel (%p330) target = $region52
        $region51: #{tpu_custom_call.1} parent=47 // pred_region
          %s333 = sand.u32 %s114, 1
          %s334 = scalar_lea.sflag [#allocation4], %s333
          %s335 = sand.u32 %s114, 1
          %s336 = smul.addr %s335, 2
          %s337 = scalar_lea.vmem [#allocation7], %s336
          %338 = dma.done %s334, 32
        $region52: #{tpu_custom_call.1} parent=47 // pred_fallthru
          _
      $region48: #{tpu_custom_call.1} parent=5 // pred_fallthru
        _
    $region6: #{tpu_custom_call.1} parent=1 // loop_footer
      %s20 = sadd.s32 1, %s16
    $region7: #{tpu_custom_call.1} parent=1 // loop_footer_branch
      %15 = sbr.rel target = $region3
    $region8: #{tpu_custom_call.1} parent=1 // loop_exit
      _
    %339 = vsyncpa [#allocation3], 1
    %s340 = scalar_lea.sflag [#allocation3], 1
    %341 = vsyncpa %s340, 1
    %342 = vsyncpa [#allocation6], 1
    %343 = vsyncpa [#allocation4], 1
    %s344 = scalar_lea.sflag [#allocation4], 1
    %345 = vsyncpa %s344, 1

</llo_original>
